<compile_context>
chip_gen: v6e
topology: v6e:2x2x1
jax: 0.10.0
libtpu: 0.0.40
codegen_flags: <defaults>
</compile_context>

<pallas_src>
import math

import jax
import jax.numpy as jnp
from jax.experimental import pallas as pl
from jax.experimental.pallas import tpu as pltpu


_SIZES = [11, 128, 64, 32, 16, 2]
_BN_EPS = 1e-5
_OUT_PAD = 128            # pad the 2-wide logits to a lane-dense 128-wide store
_DEFAULT_TILE_B = 1024    # multiple of 128 (keeps v5e MXU M-tiles fed)


def _round_up(n, m):
    return ((n + m - 1) // m) * m


# ---------------------------------------------------------------------------
# Kernel: fused 5-layer MLP (BN folded, dropout identity)
# ---------------------------------------------------------------------------
def mlp_kernel(x_ref,
               w1, b1, w2, b2, w3, b3, w4, b4, w5, b5,
               out_ref):
    def layer(h, w, b):
        z = jnp.dot(h, w[...], preferred_element_type=jnp.float32) + b[...]
        return jnp.maximum(z, 0.0)   # ReLU (Dropout = identity at eval)

    h = x_ref[...]
    h = layer(h, w1, b1)
    h = layer(h, w2, b2)
    h = layer(h, w3, b3)
    h = layer(h, w4, b4)
    # Final Linear, padded to 128 output columns -> unmasked lane-dense stores.
    out_ref[...] = jnp.dot(h, w5[...], preferred_element_type=jnp.float32) + b5[...]


# ---------------------------------------------------------------------------
# Parameter construction (matches PyTorch __init__ at eval time)
# ---------------------------------------------------------------------------
def make_raw_params(key):
    """Xavier-uniform W, zero b; BN: gamma=1, beta=0, running_mean=0, running_var=1."""
    params = []
    keys = jax.random.split(key, len(_SIZES) - 1)
    for li, (fan_in, fan_out) in enumerate(zip(_SIZES[:-1], _SIZES[1:])):
        limit = math.sqrt(6.0 / (fan_in + fan_out))
        w = jax.random.uniform(keys[li], (fan_in, fan_out), jnp.float32,
                               minval=-limit, maxval=limit)
        b = jnp.zeros((fan_out,), jnp.float32)
        if li < len(_SIZES) - 2:
            bn = dict(gamma=jnp.ones((fan_out,), jnp.float32),
                      beta=jnp.zeros((fan_out,), jnp.float32),
                      mean=jnp.zeros((fan_out,), jnp.float32),
                      var=jnp.ones((fan_out,), jnp.float32))
        else:
            bn = None
        params.append((w, b, bn))
    return params


def fold_params(raw_params):
    """Fold BN (eval) affine into each Linear and pad the last layer to 128 columns."""
    kparams = []
    n_layers = len(raw_params)
    for li, (w, b, bn) in enumerate(raw_params):
        if bn is not None:
            scale = bn["gamma"] / jnp.sqrt(bn["var"] + _BN_EPS)
            shift = bn["beta"] - bn["mean"] * scale
            w = w * scale[None, :]
            b = b * scale + shift
        if li == n_layers - 1:
            # Pad final (16, 2) -> (16, 128) and bias (2,) -> (128,) for lane-dense output.
            w = jnp.pad(w, ((0, 0), (0, _OUT_PAD - w.shape[1])))
            b = jnp.pad(b, ((0, _OUT_PAD - b.shape[0]),))
        kparams.append(w)
        kparams.append(b.reshape(1, -1))
    return kparams


# ---------------------------------------------------------------------------
# Wrapper
# ---------------------------------------------------------------------------
def detector_forward(x, kparams, tile_b=_DEFAULT_TILE_B):
    B, F = x.shape
    assert F == _SIZES[0]

    # Tile size: multiple of 128; shrink for tiny batches so we do not pad to 1024 rows.
    tb = min(tile_b, _round_up(B, 128))
    Bp = _round_up(B, tb)
    if Bp != B:
        x = jnp.pad(x, ((0, Bp - B), (0, 0)))
    grid = (Bp // tb,)

    # x/out are tiled over the batch; every weight/bias is a full-shape resident block.
    in_specs = [pl.BlockSpec((tb, F), lambda i: (i, 0))]
    for p in kparams:
        shape = p.shape
        in_specs.append(pl.BlockSpec(shape, lambda i: (0, 0)))
    out_specs = pl.BlockSpec((tb, _OUT_PAD), lambda i: (i, 0))

    flops_per_row = 2 * sum(a * b for a, b in zip(_SIZES[:-1], _SIZES[1:]))
    weight_bytes = sum(int(p.size) * 4 for p in kparams)
    cost = pl.CostEstimate(
        flops=flops_per_row * Bp,
        transcendentals=0,
        bytes_accessed=Bp * (F + _OUT_PAD) * 4 + weight_bytes,
    )

    out = pl.pallas_call(
        mlp_kernel,
        out_shape=jax.ShapeDtypeStruct((Bp, _OUT_PAD), jnp.float32),
        grid=grid,
        in_specs=in_specs,
        out_specs=out_specs,
        compiler_params=pltpu.CompilerParams(
            dimension_semantics=("parallel",),
            vmem_limit_bytes=32 * 1024 * 1024,
        ),
        cost_estimate=cost,
    )(x, *kparams)

    return out[:B, :_SIZES[-1]]


# ---------------------------------------------------------------------------
# Pure-JAX reference (explicit BN eval math) for correctness checking
# ---------------------------------------------------------------------------
def reference_forward(x, raw_params):
    h = x
    for li, (w, b, bn) in enumerate(raw_params):
        h = h @ w + b[None, :]
        if bn is not None:
            h = (h - bn["mean"]) / jnp.sqrt(bn["var"] + _BN_EPS) * bn["gamma"] + bn["beta"]
            h = jnp.maximum(h, 0.0)   # ReLU; Dropout is identity at eval
    return h


if __name__ == "__main__":
    key = jax.random.PRNGKey(0)
    k_param, k_x = jax.random.split(key)

    raw = make_raw_params(k_param)
    kparams = fold_params(raw)

    x = jax.random.normal(k_x, (8, 11), dtype=jnp.float32)  # batch=8, 11 features

    out = detector_forward(x, kparams)
    jax.block_until_ready(out)

    ref = reference_forward(x, raw)
    assert out.shape == (8, 2) and out.dtype == jnp.float32
    assert jnp.allclose(out, ref, atol=1e-4, rtol=1e-4), (
        f"max abs err {jnp.max(jnp.abs(out - ref))}")
    print("KERNEL_OK")
</pallas_src>

<mosaic_0001>
module attributes {stable_mosaic.version = 11 : i64} {
  func.func @mlp_kernel(%arg0: i32, %arg1: memref<128x11xf32, #tpu.memory_space<vmem>>, %arg2: memref<11x128xf32, #tpu.memory_space<vmem>>, %arg3: memref<1x128xf32, #tpu.memory_space<vmem>>, %arg4: memref<128x64xf32, #tpu.memory_space<vmem>>, %arg5: memref<1x64xf32, #tpu.memory_space<vmem>>, %arg6: memref<64x32xf32, #tpu.memory_space<vmem>>, %arg7: memref<1x32xf32, #tpu.memory_space<vmem>>, %arg8: memref<32x16xf32, #tpu.memory_space<vmem>>, %arg9: memref<1x16xf32, #tpu.memory_space<vmem>>, %arg10: memref<16x128xf32, #tpu.memory_space<vmem>>, %arg11: memref<1x128xf32, #tpu.memory_space<vmem>>, %arg12: memref<128x128xf32, #tpu.memory_space<vmem>>) attributes {dimension_semantics = [#tpu.dimension_semantics<parallel>], iteration_bounds = array<i64: 1>, scalar_prefetch = 0 : i64, scratch_operands = 0 : i64, tpu.core_type = #tpu.core_type<tc>, window_params = [{transform_indices = @transform_0, window_bounds = array<i64: 128, 11>}, {pipeline_mode = #tpu.pipeline_mode<synchronous>, transform_indices = @transform_1, window_bounds = array<i64: 11, 128>}, {pipeline_mode = #tpu.pipeline_mode<synchronous>, transform_indices = @transform_2, window_bounds = array<i64: 1, 128>}, {pipeline_mode = #tpu.pipeline_mode<synchronous>, transform_indices = @transform_3, window_bounds = array<i64: 128, 64>}, {pipeline_mode = #tpu.pipeline_mode<synchronous>, transform_indices = @transform_4, window_bounds = array<i64: 1, 64>}, {pipeline_mode = #tpu.pipeline_mode<synchronous>, transform_indices = @transform_5, window_bounds = array<i64: 64, 32>}, {pipeline_mode = #tpu.pipeline_mode<synchronous>, transform_indices = @transform_6, window_bounds = array<i64: 1, 32>}, {pipeline_mode = #tpu.pipeline_mode<synchronous>, transform_indices = @transform_7, window_bounds = array<i64: 32, 16>}, {pipeline_mode = #tpu.pipeline_mode<synchronous>, transform_indices = @transform_8, window_bounds = array<i64: 1, 16>}, {pipeline_mode = #tpu.pipeline_mode<synchronous>, transform_indices = @transform_9, window_bounds = array<i64: 16, 128>}, {pipeline_mode = #tpu.pipeline_mode<synchronous>, transform_indices = @transform_10, window_bounds = array<i64: 1, 128>}, {transform_indices = @transform_11, window_bounds = array<i64: 128, 128>}]} {
    %c0 = arith.constant 0 : index
    %c0_0 = arith.constant 0 : index
    %0 = vector.load %arg1[%c0, %c0_0] : memref<128x11xf32, #tpu.memory_space<vmem>>, vector<128x11xf32>
    %c0_1 = arith.constant 0 : index
    %c0_2 = arith.constant 0 : index
    %1 = vector.load %arg2[%c0_1, %c0_2] : memref<11x128xf32, #tpu.memory_space<vmem>>, vector<11x128xf32>
    %cst = arith.constant dense<0.000000e+00> : vector<128x128xf32>
    %2 = tpu.matmul %0, %1, %cst {dimension_numbers = #tpu.dot_dimension_numbers<[1], [0], [0], [1], [0, 0, 1, 1], [], []>} : vector<128x11xf32>, vector<11x128xf32>, vector<128x128xf32> -> vector<128x128xf32>
    %c0_3 = arith.constant 0 : index
    %c0_4 = arith.constant 0 : index
    %3 = vector.load %arg3[%c0_3, %c0_4] : memref<1x128xf32, #tpu.memory_space<vmem>>, vector<1x128xf32>
    %4 = vector.broadcast %3 : vector<1x128xf32> to vector<128x128xf32>
    %5 = arith.addf %2, %4 : vector<128x128xf32>
    %cst_5 = arith.constant 0.000000e+00 : f32
    %6 = vector.broadcast %cst_5 : f32 to vector<128x128xf32>
    %7 = arith.maximumf %5, %6 : vector<128x128xf32>
    %c0_6 = arith.constant 0 : index
    %c0_7 = arith.constant 0 : index
    %8 = vector.load %arg4[%c0_6, %c0_7] : memref<128x64xf32, #tpu.memory_space<vmem>>, vector<128x64xf32>
    %cst_8 = arith.constant dense<0.000000e+00> : vector<128x64xf32>
    %9 = tpu.matmul %7, %8, %cst_8 {dimension_numbers = #tpu.dot_dimension_numbers<[1], [0], [0], [1], [0, 0, 1, 1], [], []>} : vector<128x128xf32>, vector<128x64xf32>, vector<128x64xf32> -> vector<128x64xf32>
    %c0_9 = arith.constant 0 : index
    %c0_10 = arith.constant 0 : index
    %10 = vector.load %arg5[%c0_9, %c0_10] : memref<1x64xf32, #tpu.memory_space<vmem>>, vector<1x64xf32>
    %11 = vector.broadcast %10 : vector<1x64xf32> to vector<128x64xf32>
    %12 = arith.addf %9, %11 : vector<128x64xf32>
    %cst_11 = arith.constant 0.000000e+00 : f32
    %13 = vector.broadcast %cst_11 : f32 to vector<128x64xf32>
    %14 = arith.maximumf %12, %13 : vector<128x64xf32>
    %c0_12 = arith.constant 0 : index
    %c0_13 = arith.constant 0 : index
    %15 = vector.load %arg6[%c0_12, %c0_13] : memref<64x32xf32, #tpu.memory_space<vmem>>, vector<64x32xf32>
    %cst_14 = arith.constant dense<0.000000e+00> : vector<128x32xf32>
    %16 = tpu.matmul %14, %15, %cst_14 {dimension_numbers = #tpu.dot_dimension_numbers<[1], [0], [0], [1], [0, 0, 1, 1], [], []>} : vector<128x64xf32>, vector<64x32xf32>, vector<128x32xf32> -> vector<128x32xf32>
    %c0_15 = arith.constant 0 : index
    %c0_16 = arith.constant 0 : index
    %17 = vector.load %arg7[%c0_15, %c0_16] : memref<1x32xf32, #tpu.memory_space<vmem>>, vector<1x32xf32>
    %18 = vector.broadcast %17 : vector<1x32xf32> to vector<128x32xf32>
    %19 = arith.addf %16, %18 : vector<128x32xf32>
    %cst_17 = arith.constant 0.000000e+00 : f32
    %20 = vector.broadcast %cst_17 : f32 to vector<128x32xf32>
    %21 = arith.maximumf %19, %20 : vector<128x32xf32>
    %c0_18 = arith.constant 0 : index
    %c0_19 = arith.constant 0 : index
    %22 = vector.load %arg8[%c0_18, %c0_19] : memref<32x16xf32, #tpu.memory_space<vmem>>, vector<32x16xf32>
    %cst_20 = arith.constant dense<0.000000e+00> : vector<128x16xf32>
    %23 = tpu.matmul %21, %22, %cst_20 {dimension_numbers = #tpu.dot_dimension_numbers<[1], [0], [0], [1], [0, 0, 1, 1], [], []>} : vector<128x32xf32>, vector<32x16xf32>, vector<128x16xf32> -> vector<128x16xf32>
    %c0_21 = arith.constant 0 : index
    %c0_22 = arith.constant 0 : index
    %24 = vector.load %arg9[%c0_21, %c0_22] : memref<1x16xf32, #tpu.memory_space<vmem>>, vector<1x16xf32>
    %25 = vector.broadcast %24 : vector<1x16xf32> to vector<128x16xf32>
    %26 = arith.addf %23, %25 : vector<128x16xf32>
    %cst_23 = arith.constant 0.000000e+00 : f32
    %27 = vector.broadcast %cst_23 : f32 to vector<128x16xf32>
    %28 = arith.maximumf %26, %27 : vector<128x16xf32>
    %c0_24 = arith.constant 0 : index
    %c0_25 = arith.constant 0 : index
    %29 = vector.load %arg10[%c0_24, %c0_25] : memref<16x128xf32, #tpu.memory_space<vmem>>, vector<16x128xf32>
    %cst_26 = arith.constant dense<0.000000e+00> : vector<128x128xf32>
    %30 = tpu.matmul %28, %29, %cst_26 {dimension_numbers = #tpu.dot_dimension_numbers<[1], [0], [0], [1], [0, 0, 1, 1], [], []>} : vector<128x16xf32>, vector<16x128xf32>, vector<128x128xf32> -> vector<128x128xf32>
    %c0_27 = arith.constant 0 : index
    %c0_28 = arith.constant 0 : index
    %31 = vector.load %arg11[%c0_27, %c0_28] : memref<1x128xf32, #tpu.memory_space<vmem>>, vector<1x128xf32>
    %32 = vector.broadcast %31 : vector<1x128xf32> to vector<128x128xf32>
    %33 = arith.addf %30, %32 : vector<128x128xf32>
    %c0_29 = arith.constant 0 : index
    %c0_30 = arith.constant 0 : index
    %34 = vector.load %arg12[%c0_29, %c0_30] : memref<128x128xf32, #tpu.memory_space<vmem>>, vector<128x128xf32>
    tpu.vector_store %arg12[%c0_29, %c0_30], %33 {strides = array<i32>} : memref<128x128xf32, #tpu.memory_space<vmem>>, vector<128x128xf32>,
    return
  }
  func.func @transform_0(%arg0: i32) -> (i32, i32) {
    %c0_i32 = arith.constant 0 : i32
    %c0_i32_0 = arith.constant 0 : i32
    return %arg0, %c0_i32 : i32, i32
  }
  func.func @transform_1(%arg0: i32) -> (i32, i32) {
    %c0_i32 = arith.constant 0 : i32
    %c0_i32_0 = arith.constant 0 : i32
    %c0_i32_1 = arith.constant 0 : i32
    return %c0_i32, %c0_i32_0 : i32, i32
  }
  func.func @transform_2(%arg0: i32) -> (i32, i32) {
    %c0_i32 = arith.constant 0 : i32
    %c0_i32_0 = arith.constant 0 : i32
    %c0_i32_1 = arith.constant 0 : i32
    return %c0_i32, %c0_i32_0 : i32, i32
  }
  func.func @transform_3(%arg0: i32) -> (i32, i32) {
    %c0_i32 = arith.constant 0 : i32
    %c0_i32_0 = arith.constant 0 : i32
    %c0_i32_1 = arith.constant 0 : i32
    return %c0_i32, %c0_i32_0 : i32, i32
  }
  func.func @transform_4(%arg0: i32) -> (i32, i32) {
    %c0_i32 = arith.constant 0 : i32
    %c0_i32_0 = arith.constant 0 : i32
    %c0_i32_1 = arith.constant 0 : i32
    return %c0_i32, %c0_i32_0 : i32, i32
  }
  func.func @transform_5(%arg0: i32) -> (i32, i32) {
    %c0_i32 = arith.constant 0 : i32
    %c0_i32_0 = arith.constant 0 : i32
    %c0_i32_1 = arith.constant 0 : i32
    return %c0_i32, %c0_i32_0 : i32, i32
  }
  func.func @transform_6(%arg0: i32) -> (i32, i32) {
    %c0_i32 = arith.constant 0 : i32
    %c0_i32_0 = arith.constant 0 : i32
    %c0_i32_1 = arith.constant 0 : i32
    return %c0_i32, %c0_i32_0 : i32, i32
  }
  func.func @transform_7(%arg0: i32) -> (i32, i32) {
    %c0_i32 = arith.constant 0 : i32
    %c0_i32_0 = arith.constant 0 : i32
    %c0_i32_1 = arith.constant 0 : i32
    return %c0_i32, %c0_i32_0 : i32, i32
  }
  func.func @transform_8(%arg0: i32) -> (i32, i32) {
    %c0_i32 = arith.constant 0 : i32
    %c0_i32_0 = arith.constant 0 : i32
    %c0_i32_1 = arith.constant 0 : i32
    return %c0_i32, %c0_i32_0 : i32, i32
  }
  func.func @transform_9(%arg0: i32) -> (i32, i32) {
    %c0_i32 = arith.constant 0 : i32
    %c0_i32_0 = arith.constant 0 : i32
    %c0_i32_1 = arith.constant 0 : i32
    return %c0_i32, %c0_i32_0 : i32, i32
  }
  func.func @transform_10(%arg0: i32) -> (i32, i32) {
    %c0_i32 = arith.constant 0 : i32
    %c0_i32_0 = arith.constant 0 : i32
    %c0_i32_1 = arith.constant 0 : i32
    return %c0_i32, %c0_i32_0 : i32, i32
  }
  func.func @transform_11(%arg0: i32) -> (i32, i32) {
    %c0_i32 = arith.constant 0 : i32
    %c0_i32_0 = arith.constant 0 : i32
    return %arg0, %c0_i32 : i32, i32
  }
}

</mosaic_0001>

<llo_original>
// kernel: tpu_custom_call.1
$region0: #{tpu_custom_call.1}
  #allocation0 [shape = 'u32[]', space=smem, size = 0x4, offset = 0x4, fixed_abs, tag = 'smem constant byte address 0x4 - core index']
  #allocation1 [shape = 'u32[144,128]{1,0:T(1,128)}', space=vmem, size = 0x12000, scoped, tag = 'internal scratch']
  %s0 = inlined_call_operand.vmem [shape: f32[128,11], index: 0, kind: input, shape index: {}]
  %s1 = inlined_call_operand.vmem [shape: f32[11,128], index: 1, kind: input, shape index: {}]
  %s2 = inlined_call_operand.vmem [shape: f32[1,128], index: 2, kind: input, shape index: {}]
  %s3 = inlined_call_operand.vmem [shape: f32[128,64], index: 3, kind: input, shape index: {}]
  %s4 = inlined_call_operand.vmem [shape: f32[1,64], index: 4, kind: input, shape index: {}]
  %s5 = inlined_call_operand.vmem [shape: f32[64,32], index: 5, kind: input, shape index: {}]
  %s6 = inlined_call_operand.vmem [shape: f32[1,32], index: 6, kind: input, shape index: {}]
  %s7 = inlined_call_operand.vmem [shape: f32[32,16], index: 7, kind: input, shape index: {}]
  %s8 = inlined_call_operand.vmem [shape: f32[1,16], index: 8, kind: input, shape index: {}]
  %s9 = inlined_call_operand.vmem [shape: f32[16,128], index: 9, kind: input, shape index: {}]
  %s10 = inlined_call_operand.vmem [shape: f32[1,128], index: 10, kind: input, shape index: {}]
  %s11 = inlined_call_operand.hbm [shape: f32[128,128], index: 11, kind: output, shape index: {}]
  %s12 = sld [smem:[#allocation0]]
  $region54: #{tpu_custom_call.1} parent=0
    _
  %s14 = ssub.s32 1, %s12
  %s15 = scalar_select 0, %s14, %s12
  $region1: #{tpu_custom_call.1} parent=0
    #allocation2 [shape = 'u8[65536]{0}', space=vmem, size = 0x10000, scoped, tag = 'output window, operand 0, single buffered']
    #allocation3 [shape = 's32[1]{0}', space=sflag, size = 0x4, scoped, tag = 'scoped memory for tpu_custom_call.1']
    %16 = vsyncpa [#allocation3], 0
    // Predicated region
    $region2: #{tpu_custom_call.1} parent=1 // pred_check
      _
    $region3: #{tpu_custom_call.1} parent=1 // pred_check_branch
      %18 = sbr.rel (0) target = $region5
    $region4: #{tpu_custom_call.1} parent=1 // pred_region
      _
    $region5: #{tpu_custom_call.1} parent=1 // pred_fallthru
      _
    // Predicated region
    $region6: #{tpu_custom_call.1} parent=1 // pred_check
      _
    $region7: #{tpu_custom_call.1} parent=1 // pred_check_branch
      %20 = sbr.rel (0) target = $region9
    $region8: #{tpu_custom_call.1} parent=1 // pred_region
      _
    $region9: #{tpu_custom_call.1} parent=1 // pred_fallthru
      _
    // Predicated region
    $region10: #{tpu_custom_call.1} parent=1 // pred_check
      _
    $region11: #{tpu_custom_call.1} parent=1 // pred_check_branch
      %22 = sbr.rel (0) target = $region13
    $region12: #{tpu_custom_call.1} parent=1 // pred_region
      _
    $region13: #{tpu_custom_call.1} parent=1 // pred_fallthru
      _
    // Predicated region
    $region14: #{tpu_custom_call.1} parent=1 // pred_check
      _
    $region15: #{tpu_custom_call.1} parent=1 // pred_check_branch
      %24 = sbr.rel (0) target = $region17
    $region16: #{tpu_custom_call.1} parent=1 // pred_region
      _
    $region17: #{tpu_custom_call.1} parent=1 // pred_fallthru
      _
    // Predicated region
    $region18: #{tpu_custom_call.1} parent=1 // pred_check
      _
    $region19: #{tpu_custom_call.1} parent=1 // pred_check_branch
      %26 = sbr.rel (0) target = $region21
    $region20: #{tpu_custom_call.1} parent=1 // pred_region
      _
    $region21: #{tpu_custom_call.1} parent=1 // pred_fallthru
      _
    // Predicated region
    $region22: #{tpu_custom_call.1} parent=1 // pred_check
      _
    $region23: #{tpu_custom_call.1} parent=1 // pred_check_branch
      %28 = sbr.rel (0) target = $region25
    $region24: #{tpu_custom_call.1} parent=1 // pred_region
      _
    $region25: #{tpu_custom_call.1} parent=1 // pred_fallthru
      _
    // Predicated region
    $region26: #{tpu_custom_call.1} parent=1 // pred_check
      _
    $region27: #{tpu_custom_call.1} parent=1 // pred_check_branch
      %30 = sbr.rel (0) target = $region29
    $region28: #{tpu_custom_call.1} parent=1 // pred_region
      _
    $region29: #{tpu_custom_call.1} parent=1 // pred_fallthru
      _
    // Predicated region
    $region30: #{tpu_custom_call.1} parent=1 // pred_check
      _
    $region31: #{tpu_custom_call.1} parent=1 // pred_check_branch
      %32 = sbr.rel (0) target = $region33
    $region32: #{tpu_custom_call.1} parent=1 // pred_region
      _
    $region33: #{tpu_custom_call.1} parent=1 // pred_fallthru
      _
    // Predicated region
    $region34: #{tpu_custom_call.1} parent=1 // pred_check
      _
    $region35: #{tpu_custom_call.1} parent=1 // pred_check_branch
      %34 = sbr.rel (0) target = $region37
    $region36: #{tpu_custom_call.1} parent=1 // pred_region
      _
    $region37: #{tpu_custom_call.1} parent=1 // pred_fallthru
      _
    // Predicated region
    $region38: #{tpu_custom_call.1} parent=1 // pred_check
      _
    $region39: #{tpu_custom_call.1} parent=1 // pred_check_branch
      %36 = sbr.rel (0) target = $region41
    $region40: #{tpu_custom_call.1} parent=1 // pred_region
      _
    $region41: #{tpu_custom_call.1} parent=1 // pred_fallthru
      _
    // Predicated region
    $region42: #{tpu_custom_call.1} parent=1 // pred_check
      _
    $region43: #{tpu_custom_call.1} parent=1 // pred_check_branch
      %38 = sbr.rel (0) target = $region45
    $region44: #{tpu_custom_call.1} parent=1 // pred_region
      _
    $region45: #{tpu_custom_call.1} parent=1 // pred_fallthru
      _
    %v39 = vld [vmem:[%s0] sm:$0xff]
    %v40 = vld [vmem:[%s0 + $0x8] sm:$0xff]
    %v41 = vld [vmem:[%s0 + $0x10] sm:$0xff]
    %v42 = vld [vmem:[%s0 + $0x18] sm:$0xff]
    %v43 = vld [vmem:[%s0 + $0x20] sm:$0xff]
    %v44 = vld [vmem:[%s0 + $0x28] sm:$0xff]
    %v45 = vld [vmem:[%s0 + $0x30] sm:$0xff]
    %v46 = vld [vmem:[%s0 + $0x38] sm:$0xff]
    %v47 = vld [vmem:[%s0 + $0x40] sm:$0xff]
    %v48 = vld [vmem:[%s0 + $0x48] sm:$0xff]
    %v49 = vld [vmem:[%s0 + $0x50] sm:$0xff]
    %v50 = vld [vmem:[%s0 + $0x58] sm:$0xff]
    %v51 = vld [vmem:[%s0 + $0x60] sm:$0xff]
    %v52 = vld [vmem:[%s0 + $0x68] sm:$0xff]
    %v53 = vld [vmem:[%s0 + $0x70] sm:$0xff]
    %v54 = vld [vmem:[%s0 + $0x78] sm:$0xff]
    %v55 = vld [vmem:[%s1] sm:$0xff]
    %v56 = vld [vmem:[%s1 + $0x8] sm:$0x7]
    %v57 = vld [vmem:[%s2] sm:$0x1]
    %v59 = vlaneseq
    %v60 = vshrl.u32 %v59, 7
    %v61 = vsub.s32 0, %v60
    %v62 = vrot.slane %v57, %v61
    %vm64 = vcmask 89088
    %v66 = vsel %vm64, %v39, 0
    %v69 = vsel %vm64, %v40, 0
    %v72 = vsel %vm64, %v41, 0
    %v75 = vsel %vm64, %v42, 0
    %v78 = vsel %vm64, %v43, 0
    %v81 = vsel %vm64, %v44, 0
    %v84 = vsel %vm64, %v45, 0
    %v87 = vsel %vm64, %v46, 0
    %v90 = vsel %vm64, %v47, 0
    %v93 = vsel %vm64, %v48, 0
    %v96 = vsel %vm64, %v49, 0
    %v99 = vsel %vm64, %v50, 0
    %v102 = vsel %vm64, %v51, 0
    %v105 = vsel %vm64, %v52, 0
    %v108 = vsel %vm64, %v53, 0
    %v111 = vsel %vm64, %v54, 0
    %vm113 = vcmask 1042432
    %v115 = vsel %vm113, %v56, 0
    %117 = vmatprep.subr.mxu0 0.0
    %118 = vmatpush1.msra.mxu0 0.0
    %119 = vmatprep.subr.mxu0 0.0
    %120 = vmatpush1.msra.mxu0 0.0
    %121 = vmatprep.subr.mxu0 0.0
    %122 = vmatpush1.msra.mxu0 0.0
    %123 = vmatprep.subr.mxu0 0.0
    %124 = vmatpush1.msra.mxu0 0.0
    %125 = vmatprep.subr.mxu0 0.0
    %126 = vmatpush1.msra.mxu0 0.0
    %127 = vmatprep.subr.mxu0 0.0
    %128 = vmatpush1.msra.mxu0 0.0
    %129 = vmatprep.subr.mxu0 0.0
    %130 = vmatpush1.msra.mxu0 0.0
    %131 = vmatprep.subr.mxu0 0.0
    %132 = vmatpush1.msra.mxu0 0.0
    %133 = vmatprep.subr.mxu0 0.0
    %134 = vmatpush1.msra.mxu0 0.0
    %135 = vmatprep.subr.mxu0 0.0
    %136 = vmatpush1.msra.mxu0 0.0
    %137 = vmatprep.subr.mxu0 0.0
    %138 = vmatpush1.msra.mxu0 0.0
    %139 = vmatprep.subr.mxu0 0.0
    %140 = vmatpush1.msra.mxu0 0.0
    %141 = vmatprep.subr.mxu0 0.0
    %142 = vmatpush1.msra.mxu0 0.0
    %143 = vmatprep.subr.mxu0 0.0
    %144 = vmatpush1.msra.mxu0 0.0
    %145 = vmatprep.subr.mxu0 0.0
    %146 = vmatpush1.msra.mxu0 %v115
    %147 = vmatprep.subr.mxu0 0.0
    %148 = vmatpush1.msra.mxu0 %v55
    %149 = vmatprep.subr.mxu0 0.0
    %150 = vmatpush2.msra.mxu0 0.0
    %151 = vmatprep.subr.mxu0 0.0
    %152 = vmatpush2.msra.mxu0 0.0
    %153 = vmatprep.subr.mxu0 0.0
    %154 = vmatpush2.msra.mxu0 0.0
    %155 = vmatprep.subr.mxu0 0.0
    %156 = vmatpush2.msra.mxu0 0.0
    %157 = vmatprep.subr.mxu0 0.0
    %158 = vmatpush2.msra.mxu0 0.0
    %159 = vmatprep.subr.mxu0 0.0
    %160 = vmatpush2.msra.mxu0 0.0
    %161 = vmatprep.subr.mxu0 0.0
    %162 = vmatpush2.msra.mxu0 0.0
    %163 = vmatprep.subr.mxu0 0.0
    %164 = vmatpush2.msra.mxu0 0.0
    %165 = vmatprep.subr.mxu0 0.0
    %166 = vmatpush2.msra.mxu0 0.0
    %167 = vmatprep.subr.mxu0 0.0
    %168 = vmatpush2.msra.mxu0 0.0
    %169 = vmatprep.subr.mxu0 0.0
    %170 = vmatpush2.msra.mxu0 0.0
    %171 = vmatprep.subr.mxu0 0.0
    %172 = vmatpush2.msra.mxu0 0.0
    %173 = vmatprep.subr.mxu0 0.0
    %174 = vmatpush2.msra.mxu0 0.0
    %175 = vmatprep.subr.mxu0 0.0
    %176 = vmatpush2.msra.mxu0 0.0
    %177 = vmatprep.subr.mxu0 0.0
    %178 = vmatpush2.msra.mxu0 0.0
    %179 = vmatprep.subr.mxu0 0.0
    %180 = vmatpush2.msra.mxu0 0.0
    %181 = vmatprep.mubr.f32.mxu0 0.0
    %182 = vmatmul.mubr.f32.gmra.mxu0 %v66
    %v183 = vpop.f32.mrf.mxu0
    %v184 = vadd.f32 %v62, %v183
    %v185 = vpop.f32.mrf.mxu0
    %186 = vmatprep.mubr.f32.mxu0 0.0
    %187 = vmatmul.mubr.f32.gmra.mxu0 %v69
    %v188 = vpop.f32.mrf.mxu0
    %v189 = vadd.f32 %v62, %v188
    %v190 = vpop.f32.mrf.mxu0
    %191 = vmatprep.mubr.f32.mxu0 0.0
    %192 = vmatmul.mubr.f32.gmra.mxu0 %v72
    %v193 = vpop.f32.mrf.mxu0
    %v194 = vadd.f32 %v62, %v193
    %v195 = vpop.f32.mrf.mxu0
    %196 = vmatprep.mubr.f32.mxu0 0.0
    %197 = vmatmul.mubr.f32.gmra.mxu0 %v75
    %v198 = vpop.f32.mrf.mxu0
    %v199 = vadd.f32 %v62, %v198
    %v200 = vpop.f32.mrf.mxu0
    %201 = vmatprep.mubr.f32.mxu0 0.0
    %202 = vmatmul.mubr.f32.gmra.mxu0 %v78
    %v203 = vpop.f32.mrf.mxu0
    %v204 = vadd.f32 %v62, %v203
    %v205 = vpop.f32.mrf.mxu0
    %206 = vmatprep.mubr.f32.mxu0 0.0
    %207 = vmatmul.mubr.f32.gmra.mxu0 %v81
    %v208 = vpop.f32.mrf.mxu0
    %v209 = vadd.f32 %v62, %v208
    %v210 = vpop.f32.mrf.mxu0
    %211 = vmatprep.mubr.f32.mxu0 0.0
    %212 = vmatmul.mubr.f32.gmra.mxu0 %v84
    %v213 = vpop.f32.mrf.mxu0
    %v214 = vadd.f32 %v62, %v213
    %v215 = vpop.f32.mrf.mxu0
    %216 = vmatprep.mubr.f32.mxu0 0.0
    %217 = vmatmul.mubr.f32.gmra.mxu0 %v87
    %v218 = vpop.f32.mrf.mxu0
    %v219 = vadd.f32 %v62, %v218
    %v220 = vpop.f32.mrf.mxu0
    %221 = vmatprep.mubr.f32.mxu0 0.0
    %222 = vmatmul.mubr.f32.gmra.mxu0 %v90
    %v223 = vpop.f32.mrf.mxu0
    %v224 = vadd.f32 %v62, %v223
    %v225 = vpop.f32.mrf.mxu0
    %226 = vmatprep.mubr.f32.mxu0 0.0
    %227 = vmatmul.mubr.f32.gmra.mxu0 %v93
    %v228 = vpop.f32.mrf.mxu0
    %v229 = vadd.f32 %v62, %v228
    %v230 = vpop.f32.mrf.mxu0
    %231 = vmatprep.mubr.f32.mxu0 0.0
    %232 = vmatmul.mubr.f32.gmra.mxu0 %v96
    %v233 = vpop.f32.mrf.mxu0
    %v234 = vadd.f32 %v62, %v233
    %v235 = vpop.f32.mrf.mxu0
    %236 = vmatprep.mubr.f32.mxu0 0.0
    %237 = vmatmul.mubr.f32.gmra.mxu0 %v99
    %v238 = vpop.f32.mrf.mxu0
    %v239 = vadd.f32 %v62, %v238
    %v240 = vpop.f32.mrf.mxu0
    %241 = vmatprep.mubr.f32.mxu0 0.0
    %242 = vmatmul.mubr.f32.gmra.mxu0 %v102
    %v243 = vpop.f32.mrf.mxu0
    %v244 = vadd.f32 %v62, %v243
    %v245 = vpop.f32.mrf.mxu0
    %246 = vmatprep.mubr.f32.mxu0 0.0
    %247 = vmatmul.mubr.f32.gmra.mxu0 %v105
    %v248 = vpop.f32.mrf.mxu0
    %v249 = vadd.f32 %v62, %v248
    %v250 = vpop.f32.mrf.mxu0
    %251 = vmatprep.mubr.f32.mxu0 0.0
    %252 = vmatmul.mubr.f32.gmra.mxu0 %v108
    %v253 = vpop.f32.mrf.mxu0
    %v254 = vadd.f32 %v62, %v253
    %v255 = vpop.f32.mrf.mxu0
    %256 = vmatprep.mubr.f32.mxu0 0.0
    %257 = vmatmul.mubr.f32.gmra.mxu0 %v111
    %v258 = vpop.f32.mrf.mxu0
    %v259 = vadd.f32 %v62, %v258
    %v260 = vpop.f32.mrf.mxu0
    %261 = vdwg.mxu0
    %v262 = vmax.f32 %v184, 0.0
    %v263 = vmax.f32 %v189, 0.0
    %v264 = vmax.f32 %v194, 0.0
    %v265 = vmax.f32 %v199, 0.0
    %v266 = vmax.f32 %v204, 0.0
    %v267 = vmax.f32 %v209, 0.0
    %v268 = vmax.f32 %v214, 0.0
    %v269 = vmax.f32 %v219, 0.0
    %v270 = vmax.f32 %v224, 0.0
    %v271 = vmax.f32 %v229, 0.0
    %v272 = vmax.f32 %v234, 0.0
    %v273 = vmax.f32 %v239, 0.0
    %v274 = vmax.f32 %v244, 0.0
    %v275 = vmax.f32 %v249, 0.0
    %v276 = vmax.f32 %v254, 0.0
    %v277 = vmax.f32 %v259, 0.0
    %v278 = vld [vmem:[%s3] sm:$0xff]
    %v279 = vld [vmem:[%s3 + $0x8] sm:$0xff]
    %v280 = vld [vmem:[%s3 + $0x10] sm:$0xff]
    %v281 = vld [vmem:[%s3 + $0x18] sm:$0xff]
    %v282 = vld [vmem:[%s3 + $0x20] sm:$0xff]
    %v283 = vld [vmem:[%s3 + $0x28] sm:$0xff]
    %v284 = vld [vmem:[%s3 + $0x30] sm:$0xff]
    %v285 = vld [vmem:[%s3 + $0x38] sm:$0xff]
    %v286 = vld [vmem:[%s3 + $0x40] sm:$0xff]
    %v287 = vld [vmem:[%s3 + $0x48] sm:$0xff]
    %v288 = vld [vmem:[%s3 + $0x50] sm:$0xff]
    %v289 = vld [vmem:[%s3 + $0x58] sm:$0xff]
    %v290 = vld [vmem:[%s3 + $0x60] sm:$0xff]
    %v291 = vld [vmem:[%s3 + $0x68] sm:$0xff]
    %v292 = vld [vmem:[%s3 + $0x70] sm:$0xff]
    %v293 = vld [vmem:[%s3 + $0x78] sm:$0xff]
    %v294 = vld [vmem:[%s4] sm:$0x1]
    %v296 = vlaneseq
    %v297 = vshrl.u32 %v296, 7
    %v298 = vsub.s32 0, %v297
    %v299 = vrot.slane %v294, %v298
    %301 = vmatprep.subr.mxu0 0.0
    %302 = vmatpush1.msra.mxu0 %v293
    %303 = vmatprep.subr.mxu0 0.0
    %304 = vmatpush1.msra.mxu0 %v292
    %305 = vmatprep.subr.mxu0 0.0
    %306 = vmatpush1.msra.mxu0 %v291
    %307 = vmatprep.subr.mxu0 0.0
    %308 = vmatpush1.msra.mxu0 %v290
    %309 = vmatprep.subr.mxu0 0.0
    %310 = vmatpush1.msra.mxu0 %v289
    %311 = vmatprep.subr.mxu0 0.0
    %312 = vmatpush1.msra.mxu0 %v288
    %313 = vmatprep.subr.mxu0 0.0
    %314 = vmatpush1.msra.mxu0 %v287
    %315 = vmatprep.subr.mxu0 0.0
    %316 = vmatpush1.msra.mxu0 %v286
    %317 = vmatprep.subr.mxu0 0.0
    %318 = vmatpush1.msra.mxu0 %v285
    %319 = vmatprep.subr.mxu0 0.0
    %320 = vmatpush1.msra.mxu0 %v284
    %321 = vmatprep.subr.mxu0 0.0
    %322 = vmatpush1.msra.mxu0 %v283
    %323 = vmatprep.subr.mxu0 0.0
    %324 = vmatpush1.msra.mxu0 %v282
    %325 = vmatprep.subr.mxu0 0.0
    %326 = vmatpush1.msra.mxu0 %v281
    %327 = vmatprep.subr.mxu0 0.0
    %328 = vmatpush1.msra.mxu0 %v280
    %329 = vmatprep.subr.mxu0 0.0
    %330 = vmatpush1.msra.mxu0 %v279
    %331 = vmatprep.subr.mxu0 0.0
    %332 = vmatpush1.msra.mxu0 %v278
    %333 = vmatprep.subr.mxu0 0.0
    %334 = vmatpush2.msra.mxu0 0.0
    %335 = vmatprep.subr.mxu0 0.0
    %336 = vmatpush2.msra.mxu0 0.0
    %337 = vmatprep.subr.mxu0 0.0
    %338 = vmatpush2.msra.mxu0 0.0
    %339 = vmatprep.subr.mxu0 0.0
    %340 = vmatpush2.msra.mxu0 0.0
    %341 = vmatprep.subr.mxu0 0.0
    %342 = vmatpush2.msra.mxu0 0.0
    %343 = vmatprep.subr.mxu0 0.0
    %344 = vmatpush2.msra.mxu0 0.0
    %345 = vmatprep.subr.mxu0 0.0
    %346 = vmatpush2.msra.mxu0 0.0
    %347 = vmatprep.subr.mxu0 0.0
    %348 = vmatpush2.msra.mxu0 0.0
    %349 = vmatprep.subr.mxu0 0.0
    %350 = vmatpush2.msra.mxu0 0.0
    %351 = vmatprep.subr.mxu0 0.0
    %352 = vmatpush2.msra.mxu0 0.0
    %353 = vmatprep.subr.mxu0 0.0
    %354 = vmatpush2.msra.mxu0 0.0
    %355 = vmatprep.subr.mxu0 0.0
    %356 = vmatpush2.msra.mxu0 0.0
    %357 = vmatprep.subr.mxu0 0.0
    %358 = vmatpush2.msra.mxu0 0.0
    %359 = vmatprep.subr.mxu0 0.0
    %360 = vmatpush2.msra.mxu0 0.0
    %361 = vmatprep.subr.mxu0 0.0
    %362 = vmatpush2.msra.mxu0 0.0
    %363 = vmatprep.subr.mxu0 0.0
    %364 = vmatpush2.msra.mxu0 0.0
    %365 = vmatprep.mubr.f32.mxu0 0.0
    %366 = vmatmul.mubr.f32.gmra.mxu0 %v262
    %v367 = vpop.f32.mrf.mxu0
    %v368 = vadd.f32 %v299, %v367
    %v369 = vpop.f32.mrf.mxu0
    %370 = vmatprep.mubr.f32.mxu0 0.0
    %371 = vmatmul.mubr.f32.gmra.mxu0 %v263
    %v372 = vpop.f32.mrf.mxu0
    %v373 = vadd.f32 %v299, %v372
    %v374 = vpop.f32.mrf.mxu0
    %375 = vmatprep.mubr.f32.mxu0 0.0
    %376 = vmatmul.mubr.f32.gmra.mxu0 %v264
    %v377 = vpop.f32.mrf.mxu0
    %v378 = vadd.f32 %v299, %v377
    %v379 = vpop.f32.mrf.mxu0
    %380 = vmatprep.mubr.f32.mxu0 0.0
    %381 = vmatmul.mubr.f32.gmra.mxu0 %v265
    %v382 = vpop.f32.mrf.mxu0
    %v383 = vadd.f32 %v299, %v382
    %v384 = vpop.f32.mrf.mxu0
    %385 = vmatprep.mubr.f32.mxu0 0.0
    %386 = vmatmul.mubr.f32.gmra.mxu0 %v266
    %v387 = vpop.f32.mrf.mxu0
    %v388 = vadd.f32 %v299, %v387
    %v389 = vpop.f32.mrf.mxu0
    %390 = vmatprep.mubr.f32.mxu0 0.0
    %391 = vmatmul.mubr.f32.gmra.mxu0 %v267
    %v392 = vpop.f32.mrf.mxu0
    %v393 = vadd.f32 %v299, %v392
    %v394 = vpop.f32.mrf.mxu0
    %395 = vmatprep.mubr.f32.mxu0 0.0
    %396 = vmatmul.mubr.f32.gmra.mxu0 %v268
    %v397 = vpop.f32.mrf.mxu0
    %v398 = vadd.f32 %v299, %v397
    %v399 = vpop.f32.mrf.mxu0
    %400 = vmatprep.mubr.f32.mxu0 0.0
    %401 = vmatmul.mubr.f32.gmra.mxu0 %v269
    %v402 = vpop.f32.mrf.mxu0
    %v403 = vadd.f32 %v299, %v402
    %v404 = vpop.f32.mrf.mxu0
    %405 = vmatprep.mubr.f32.mxu0 0.0
    %406 = vmatmul.mubr.f32.gmra.mxu0 %v270
    %v407 = vpop.f32.mrf.mxu0
    %v408 = vadd.f32 %v299, %v407
    %v409 = vpop.f32.mrf.mxu0
    %410 = vmatprep.mubr.f32.mxu0 0.0
    %411 = vmatmul.mubr.f32.gmra.mxu0 %v271
    %v412 = vpop.f32.mrf.mxu0
    %v413 = vadd.f32 %v299, %v412
    %v414 = vpop.f32.mrf.mxu0
    %415 = vmatprep.mubr.f32.mxu0 0.0
    %416 = vmatmul.mubr.f32.gmra.mxu0 %v272
    %v417 = vpop.f32.mrf.mxu0
    %v418 = vadd.f32 %v299, %v417
    %v419 = vpop.f32.mrf.mxu0
    %420 = vmatprep.mubr.f32.mxu0 0.0
    %421 = vmatmul.mubr.f32.gmra.mxu0 %v273
    %v422 = vpop.f32.mrf.mxu0
    %v423 = vadd.f32 %v299, %v422
    %v424 = vpop.f32.mrf.mxu0
    %425 = vmatprep.mubr.f32.mxu0 0.0
    %426 = vmatmul.mubr.f32.gmra.mxu0 %v274
    %v427 = vpop.f32.mrf.mxu0
    %v428 = vadd.f32 %v299, %v427
    %v429 = vpop.f32.mrf.mxu0
    %430 = vmatprep.mubr.f32.mxu0 0.0
    %431 = vmatmul.mubr.f32.gmra.mxu0 %v275
    %v432 = vpop.f32.mrf.mxu0
    %v433 = vadd.f32 %v299, %v432
    %v434 = vpop.f32.mrf.mxu0
    %435 = vmatprep.mubr.f32.mxu0 0.0
    %436 = vmatmul.mubr.f32.gmra.mxu0 %v276
    %v437 = vpop.f32.mrf.mxu0
    %v438 = vadd.f32 %v299, %v437
    %v439 = vpop.f32.mrf.mxu0
    %440 = vmatprep.mubr.f32.mxu0 0.0
    %441 = vmatmul.mubr.f32.gmra.mxu0 %v277
    %v442 = vpop.f32.mrf.mxu0
    %v443 = vadd.f32 %v299, %v442
    %v444 = vpop.f32.mrf.mxu0
    %445 = vdwg.mxu0
    %v446 = vmax.f32 %v368, 0.0
    %v447 = vmax.f32 %v373, 0.0
    %v448 = vmax.f32 %v378, 0.0
    %v449 = vmax.f32 %v383, 0.0
    %v450 = vmax.f32 %v388, 0.0
    %v451 = vmax.f32 %v393, 0.0
    %v452 = vmax.f32 %v398, 0.0
    %v453 = vmax.f32 %v403, 0.0
    %v454 = vmax.f32 %v408, 0.0
    %v455 = vmax.f32 %v413, 0.0
    %v456 = vmax.f32 %v418, 0.0
    %v457 = vmax.f32 %v423, 0.0
    %v458 = vmax.f32 %v428, 0.0
    %v459 = vmax.f32 %v433, 0.0
    %v460 = vmax.f32 %v438, 0.0
    %v461 = vmax.f32 %v443, 0.0
    %v462 = vld [vmem:[%s5] sm:$0xff]
    %v463 = vld [vmem:[%s5 + $0x8] sm:$0xff]
    %v464 = vld [vmem:[%s5 + $0x10] sm:$0xff]
    %v465 = vld [vmem:[%s5 + $0x18] sm:$0xff]
    %v466 = vld [vmem:[%s5 + $0x20] sm:$0xff]
    %v467 = vld [vmem:[%s5 + $0x28] sm:$0xff]
    %v468 = vld [vmem:[%s5 + $0x30] sm:$0xff]
    %v469 = vld [vmem:[%s5 + $0x38] sm:$0xff]
    %v470 = vld [vmem:[%s6] sm:$0x1]
    %v472 = vlaneseq
    %v473 = vshrl.u32 %v472, 7
    %v474 = vsub.s32 0, %v473
    %v475 = vrot.slane %v470, %v474
    %vm477 = vcmask 523264
    %v479 = vsel %vm477, %v446, 0
    %v482 = vsel %vm477, %v447, 0
    %v485 = vsel %vm477, %v448, 0
    %v488 = vsel %vm477, %v449, 0
    %v491 = vsel %vm477, %v450, 0
    %v494 = vsel %vm477, %v451, 0
    %v497 = vsel %vm477, %v452, 0
    %v500 = vsel %vm477, %v453, 0
    %v503 = vsel %vm477, %v454, 0
    %v506 = vsel %vm477, %v455, 0
    %v509 = vsel %vm477, %v456, 0
    %v512 = vsel %vm477, %v457, 0
    %v515 = vsel %vm477, %v458, 0
    %v518 = vsel %vm477, %v459, 0
    %v521 = vsel %vm477, %v460, 0
    %v524 = vsel %vm477, %v461, 0
    %526 = vmatprep.subr.mxu0 0.0
    %527 = vmatpush1.msra.mxu0 0.0
    %528 = vmatprep.subr.mxu0 0.0
    %529 = vmatpush1.msra.mxu0 0.0
    %530 = vmatprep.subr.mxu0 0.0
    %531 = vmatpush1.msra.mxu0 0.0
    %532 = vmatprep.subr.mxu0 0.0
    %533 = vmatpush1.msra.mxu0 0.0
    %534 = vmatprep.subr.mxu0 0.0
    %535 = vmatpush1.msra.mxu0 0.0
    %536 = vmatprep.subr.mxu0 0.0
    %537 = vmatpush1.msra.mxu0 0.0
    %538 = vmatprep.subr.mxu0 0.0
    %539 = vmatpush1.msra.mxu0 0.0
    %540 = vmatprep.subr.mxu0 0.0
    %541 = vmatpush1.msra.mxu0 0.0
    %542 = vmatprep.subr.mxu0 0.0
    %543 = vmatpush1.msra.mxu0 %v469
    %544 = vmatprep.subr.mxu0 0.0
    %545 = vmatpush1.msra.mxu0 %v468
    %546 = vmatprep.subr.mxu0 0.0
    %547 = vmatpush1.msra.mxu0 %v467
    %548 = vmatprep.subr.mxu0 0.0
    %549 = vmatpush1.msra.mxu0 %v466
    %550 = vmatprep.subr.mxu0 0.0
    %551 = vmatpush1.msra.mxu0 %v465
    %552 = vmatprep.subr.mxu0 0.0
    %553 = vmatpush1.msra.mxu0 %v464
    %554 = vmatprep.subr.mxu0 0.0
    %555 = vmatpush1.msra.mxu0 %v463
    %556 = vmatprep.subr.mxu0 0.0
    %557 = vmatpush1.msra.mxu0 %v462
    %558 = vmatprep.subr.mxu0 0.0
    %559 = vmatpush2.msra.mxu0 0.0
    %560 = vmatprep.subr.mxu0 0.0
    %561 = vmatpush2.msra.mxu0 0.0
    %562 = vmatprep.subr.mxu0 0.0
    %563 = vmatpush2.msra.mxu0 0.0
    %564 = vmatprep.subr.mxu0 0.0
    %565 = vmatpush2.msra.mxu0 0.0
    %566 = vmatprep.subr.mxu0 0.0
    %567 = vmatpush2.msra.mxu0 0.0
    %568 = vmatprep.subr.mxu0 0.0
    %569 = vmatpush2.msra.mxu0 0.0
    %570 = vmatprep.subr.mxu0 0.0
    %571 = vmatpush2.msra.mxu0 0.0
    %572 = vmatprep.subr.mxu0 0.0
    %573 = vmatpush2.msra.mxu0 0.0
    %574 = vmatprep.subr.mxu0 0.0
    %575 = vmatpush2.msra.mxu0 0.0
    %576 = vmatprep.subr.mxu0 0.0
    %577 = vmatpush2.msra.mxu0 0.0
    %578 = vmatprep.subr.mxu0 0.0
    %579 = vmatpush2.msra.mxu0 0.0
    %580 = vmatprep.subr.mxu0 0.0
    %581 = vmatpush2.msra.mxu0 0.0
    %582 = vmatprep.subr.mxu0 0.0
    %583 = vmatpush2.msra.mxu0 0.0
    %584 = vmatprep.subr.mxu0 0.0
    %585 = vmatpush2.msra.mxu0 0.0
    %586 = vmatprep.subr.mxu0 0.0
    %587 = vmatpush2.msra.mxu0 0.0
    %588 = vmatprep.subr.mxu0 0.0
    %589 = vmatpush2.msra.mxu0 0.0
    %590 = vmatprep.mubr.f32.mxu0 0.0
    %591 = vmatmul.mubr.f32.gmra.mxu0 %v479
    %v592 = vpop.f32.mrf.mxu0
    %v593 = vadd.f32 %v475, %v592
    %v594 = vpop.f32.mrf.mxu0
    %595 = vmatprep.mubr.f32.mxu0 0.0
    %596 = vmatmul.mubr.f32.gmra.mxu0 %v482
    %v597 = vpop.f32.mrf.mxu0
    %v598 = vadd.f32 %v475, %v597
    %v599 = vpop.f32.mrf.mxu0
    %600 = vmatprep.mubr.f32.mxu0 0.0
    %601 = vmatmul.mubr.f32.gmra.mxu0 %v485
    %v602 = vpop.f32.mrf.mxu0
    %v603 = vadd.f32 %v475, %v602
    %v604 = vpop.f32.mrf.mxu0
    %605 = vmatprep.mubr.f32.mxu0 0.0
    %606 = vmatmul.mubr.f32.gmra.mxu0 %v488
    %v607 = vpop.f32.mrf.mxu0
    %v608 = vadd.f32 %v475, %v607
    %v609 = vpop.f32.mrf.mxu0
    %610 = vmatprep.mubr.f32.mxu0 0.0
    %611 = vmatmul.mubr.f32.gmra.mxu0 %v491
    %v612 = vpop.f32.mrf.mxu0
    %v613 = vadd.f32 %v475, %v612
    %v614 = vpop.f32.mrf.mxu0
    %615 = vmatprep.mubr.f32.mxu0 0.0
    %616 = vmatmul.mubr.f32.gmra.mxu0 %v494
    %v617 = vpop.f32.mrf.mxu0
    %v618 = vadd.f32 %v475, %v617
    %v619 = vpop.f32.mrf.mxu0
    %620 = vmatprep.mubr.f32.mxu0 0.0
    %621 = vmatmul.mubr.f32.gmra.mxu0 %v497
    %v622 = vpop.f32.mrf.mxu0
    %v623 = vadd.f32 %v475, %v622
    %v624 = vpop.f32.mrf.mxu0
    %625 = vmatprep.mubr.f32.mxu0 0.0
    %626 = vmatmul.mubr.f32.gmra.mxu0 %v500
    %v627 = vpop.f32.mrf.mxu0
    %v628 = vadd.f32 %v475, %v627
    %v629 = vpop.f32.mrf.mxu0
    %630 = vmatprep.mubr.f32.mxu0 0.0
    %631 = vmatmul.mubr.f32.gmra.mxu0 %v503
    %v632 = vpop.f32.mrf.mxu0
    %v633 = vadd.f32 %v475, %v632
    %v634 = vpop.f32.mrf.mxu0
    %635 = vmatprep.mubr.f32.mxu0 0.0
    %636 = vmatmul.mubr.f32.gmra.mxu0 %v506
    %v637 = vpop.f32.mrf.mxu0
    %v638 = vadd.f32 %v475, %v637
    %v639 = vpop.f32.mrf.mxu0
    %640 = vmatprep.mubr.f32.mxu0 0.0
    %641 = vmatmul.mubr.f32.gmra.mxu0 %v509
    %v642 = vpop.f32.mrf.mxu0
    %v643 = vadd.f32 %v475, %v642
    %v644 = vpop.f32.mrf.mxu0
    %645 = vmatprep.mubr.f32.mxu0 0.0
    %646 = vmatmul.mubr.f32.gmra.mxu0 %v512
    %v647 = vpop.f32.mrf.mxu0
    %v648 = vadd.f32 %v475, %v647
    %v649 = vpop.f32.mrf.mxu0
    %650 = vmatprep.mubr.f32.mxu0 0.0
    %651 = vmatmul.mubr.f32.gmra.mxu0 %v515
    %v652 = vpop.f32.mrf.mxu0
    %v653 = vadd.f32 %v475, %v652
    %v654 = vpop.f32.mrf.mxu0
    %655 = vmatprep.mubr.f32.mxu0 0.0
    %656 = vmatmul.mubr.f32.gmra.mxu0 %v518
    %v657 = vpop.f32.mrf.mxu0
    %v658 = vadd.f32 %v475, %v657
    %v659 = vpop.f32.mrf.mxu0
    %660 = vmatprep.mubr.f32.mxu0 0.0
    %661 = vmatmul.mubr.f32.gmra.mxu0 %v521
    %v662 = vpop.f32.mrf.mxu0
    %v663 = vadd.f32 %v475, %v662
    %v664 = vpop.f32.mrf.mxu0
    %665 = vmatprep.mubr.f32.mxu0 0.0
    %666 = vmatmul.mubr.f32.gmra.mxu0 %v524
    %v667 = vpop.f32.mrf.mxu0
    %v668 = vadd.f32 %v475, %v667
    %v669 = vpop.f32.mrf.mxu0
    %670 = vdwg.mxu0
    %v671 = vmax.f32 %v593, 0.0
    %v672 = vmax.f32 %v598, 0.0
    %v673 = vmax.f32 %v603, 0.0
    %v674 = vmax.f32 %v608, 0.0
    %v675 = vmax.f32 %v613, 0.0
    %v676 = vmax.f32 %v618, 0.0
    %v677 = vmax.f32 %v623, 0.0
    %v678 = vmax.f32 %v628, 0.0
    %v679 = vmax.f32 %v633, 0.0
    %v680 = vmax.f32 %v638, 0.0
    %v681 = vmax.f32 %v643, 0.0
    %v682 = vmax.f32 %v648, 0.0
    %v683 = vmax.f32 %v653, 0.0
    %v684 = vmax.f32 %v658, 0.0
    %v685 = vmax.f32 %v663, 0.0
    %v686 = vmax.f32 %v668, 0.0
    %v687 = vld [vmem:[%s7] sm:$0xff]
    %v688 = vld [vmem:[%s7 + $0x8] sm:$0xff]
    %v689 = vld [vmem:[%s7 + $0x10] sm:$0xff]
    %v690 = vld [vmem:[%s7 + $0x18] sm:$0xff]
    %v691 = vld [vmem:[%s8] sm:$0x1]
    %v693 = vlaneseq
    %v694 = vshrl.u32 %v693, 7
    %v695 = vsub.s32 0, %v694
    %v696 = vrot.slane %v691, %v695
    %vm698 = vcmask 261120
    %v700 = vsel %vm698, %v671, 0
    %v703 = vsel %vm698, %v672, 0
    %v706 = vsel %vm698, %v673, 0
    %v709 = vsel %vm698, %v674, 0
    %v712 = vsel %vm698, %v675, 0
    %v715 = vsel %vm698, %v676, 0
    %v718 = vsel %vm698, %v677, 0
    %v721 = vsel %vm698, %v678, 0
    %v724 = vsel %vm698, %v679, 0
    %v727 = vsel %vm698, %v680, 0
    %v730 = vsel %vm698, %v681, 0
    %v733 = vsel %vm698, %v682, 0
    %v736 = vsel %vm698, %v683, 0
    %v739 = vsel %vm698, %v684, 0
    %v742 = vsel %vm698, %v685, 0
    %v745 = vsel %vm698, %v686, 0
    %747 = vmatprep.subr.mxu0 0.0
    %748 = vmatpush1.msra.mxu0 0.0
    %749 = vmatprep.subr.mxu0 0.0
    %750 = vmatpush1.msra.mxu0 0.0
    %751 = vmatprep.subr.mxu0 0.0
    %752 = vmatpush1.msra.mxu0 0.0
    %753 = vmatprep.subr.mxu0 0.0
    %754 = vmatpush1.msra.mxu0 0.0
    %755 = vmatprep.subr.mxu0 0.0
    %756 = vmatpush1.msra.mxu0 0.0
    %757 = vmatprep.subr.mxu0 0.0
    %758 = vmatpush1.msra.mxu0 0.0
    %759 = vmatprep.subr.mxu0 0.0
    %760 = vmatpush1.msra.mxu0 0.0
    %761 = vmatprep.subr.mxu0 0.0
    %762 = vmatpush1.msra.mxu0 0.0
    %763 = vmatprep.subr.mxu0 0.0
    %764 = vmatpush1.msra.mxu0 0.0
    %765 = vmatprep.subr.mxu0 0.0
    %766 = vmatpush1.msra.mxu0 0.0
    %767 = vmatprep.subr.mxu0 0.0
    %768 = vmatpush1.msra.mxu0 0.0
    %769 = vmatprep.subr.mxu0 0.0
    %770 = vmatpush1.msra.mxu0 0.0
    %771 = vmatprep.subr.mxu0 0.0
    %772 = vmatpush1.msra.mxu0 %v690
    %773 = vmatprep.subr.mxu0 0.0
    %774 = vmatpush1.msra.mxu0 %v689
    %775 = vmatprep.subr.mxu0 0.0
    %776 = vmatpush1.msra.mxu0 %v688
    %777 = vmatprep.subr.mxu0 0.0
    %778 = vmatpush1.msra.mxu0 %v687
    %779 = vmatprep.subr.mxu0 0.0
    %780 = vmatpush2.msra.mxu0 0.0
    %781 = vmatprep.subr.mxu0 0.0
    %782 = vmatpush2.msra.mxu0 0.0
    %783 = vmatprep.subr.mxu0 0.0
    %784 = vmatpush2.msra.mxu0 0.0
    %785 = vmatprep.subr.mxu0 0.0
    %786 = vmatpush2.msra.mxu0 0.0
    %787 = vmatprep.subr.mxu0 0.0
    %788 = vmatpush2.msra.mxu0 0.0
    %789 = vmatprep.subr.mxu0 0.0
    %790 = vmatpush2.msra.mxu0 0.0
    %791 = vmatprep.subr.mxu0 0.0
    %792 = vmatpush2.msra.mxu0 0.0
    %793 = vmatprep.subr.mxu0 0.0
    %794 = vmatpush2.msra.mxu0 0.0
    %795 = vmatprep.subr.mxu0 0.0
    %796 = vmatpush2.msra.mxu0 0.0
    %797 = vmatprep.subr.mxu0 0.0
    %798 = vmatpush2.msra.mxu0 0.0
    %799 = vmatprep.subr.mxu0 0.0
    %800 = vmatpush2.msra.mxu0 0.0
    %801 = vmatprep.subr.mxu0 0.0
    %802 = vmatpush2.msra.mxu0 0.0
    %803 = vmatprep.subr.mxu0 0.0
    %804 = vmatpush2.msra.mxu0 0.0
    %805 = vmatprep.subr.mxu0 0.0
    %806 = vmatpush2.msra.mxu0 0.0
    %807 = vmatprep.subr.mxu0 0.0
    %808 = vmatpush2.msra.mxu0 0.0
    %809 = vmatprep.subr.mxu0 0.0
    %810 = vmatpush2.msra.mxu0 0.0
    %811 = vmatprep.mubr.f32.mxu0 0.0
    %812 = vmatmul.mubr.f32.gmra.mxu0 %v700
    %v813 = vpop.f32.mrf.mxu0
    %v814 = vadd.f32 %v696, %v813
    %v815 = vpop.f32.mrf.mxu0
    %816 = vmatprep.mubr.f32.mxu0 0.0
    %817 = vmatmul.mubr.f32.gmra.mxu0 %v703
    %v818 = vpop.f32.mrf.mxu0
    %v819 = vadd.f32 %v696, %v818
    %v820 = vpop.f32.mrf.mxu0
    %821 = vmatprep.mubr.f32.mxu0 0.0
    %822 = vmatmul.mubr.f32.gmra.mxu0 %v706
    %v823 = vpop.f32.mrf.mxu0
    %v824 = vadd.f32 %v696, %v823
    %v825 = vpop.f32.mrf.mxu0
    %826 = vmatprep.mubr.f32.mxu0 0.0
    %827 = vmatmul.mubr.f32.gmra.mxu0 %v709
    %v828 = vpop.f32.mrf.mxu0
    %v829 = vadd.f32 %v696, %v828
    %v830 = vpop.f32.mrf.mxu0
    %831 = vmatprep.mubr.f32.mxu0 0.0
    %832 = vmatmul.mubr.f32.gmra.mxu0 %v712
    %v833 = vpop.f32.mrf.mxu0
    %v834 = vadd.f32 %v696, %v833
    %v835 = vpop.f32.mrf.mxu0
    %836 = vmatprep.mubr.f32.mxu0 0.0
    %837 = vmatmul.mubr.f32.gmra.mxu0 %v715
    %v838 = vpop.f32.mrf.mxu0
    %v839 = vadd.f32 %v696, %v838
    %v840 = vpop.f32.mrf.mxu0
    %841 = vmatprep.mubr.f32.mxu0 0.0
    %842 = vmatmul.mubr.f32.gmra.mxu0 %v718
    %v843 = vpop.f32.mrf.mxu0
    %v844 = vadd.f32 %v696, %v843
    %v845 = vpop.f32.mrf.mxu0
    %846 = vmatprep.mubr.f32.mxu0 0.0
    %847 = vmatmul.mubr.f32.gmra.mxu0 %v721
    %v848 = vpop.f32.mrf.mxu0
    %v849 = vadd.f32 %v696, %v848
    %v850 = vpop.f32.mrf.mxu0
    %851 = vmatprep.mubr.f32.mxu0 0.0
    %852 = vmatmul.mubr.f32.gmra.mxu0 %v724
    %v853 = vpop.f32.mrf.mxu0
    %v854 = vadd.f32 %v696, %v853
    %v855 = vpop.f32.mrf.mxu0
    %856 = vmatprep.mubr.f32.mxu0 0.0
    %857 = vmatmul.mubr.f32.gmra.mxu0 %v727
    %v858 = vpop.f32.mrf.mxu0
    %v859 = vadd.f32 %v696, %v858
    %v860 = vpop.f32.mrf.mxu0
    %861 = vmatprep.mubr.f32.mxu0 0.0
    %862 = vmatmul.mubr.f32.gmra.mxu0 %v730
    %v863 = vpop.f32.mrf.mxu0
    %v864 = vadd.f32 %v696, %v863
    %v865 = vpop.f32.mrf.mxu0
    %866 = vmatprep.mubr.f32.mxu0 0.0
    %867 = vmatmul.mubr.f32.gmra.mxu0 %v733
    %v868 = vpop.f32.mrf.mxu0
    %v869 = vadd.f32 %v696, %v868
    %v870 = vpop.f32.mrf.mxu0
    %871 = vmatprep.mubr.f32.mxu0 0.0
    %872 = vmatmul.mubr.f32.gmra.mxu0 %v736
    %v873 = vpop.f32.mrf.mxu0
    %v874 = vadd.f32 %v696, %v873
    %v875 = vpop.f32.mrf.mxu0
    %876 = vmatprep.mubr.f32.mxu0 0.0
    %877 = vmatmul.mubr.f32.gmra.mxu0 %v739
    %v878 = vpop.f32.mrf.mxu0
    %v879 = vadd.f32 %v696, %v878
    %v880 = vpop.f32.mrf.mxu0
    %881 = vmatprep.mubr.f32.mxu0 0.0
    %882 = vmatmul.mubr.f32.gmra.mxu0 %v742
    %v883 = vpop.f32.mrf.mxu0
    %v884 = vadd.f32 %v696, %v883
    %v885 = vpop.f32.mrf.mxu0
    %886 = vmatprep.mubr.f32.mxu0 0.0
    %887 = vmatmul.mubr.f32.gmra.mxu0 %v745
    %v888 = vpop.f32.mrf.mxu0
    %v889 = vadd.f32 %v696, %v888
    %v890 = vpop.f32.mrf.mxu0
    %891 = vdwg.mxu0
    %v892 = vmax.f32 %v814, 0.0
    %v893 = vmax.f32 %v819, 0.0
    %v894 = vmax.f32 %v824, 0.0
    %v895 = vmax.f32 %v829, 0.0
    %v896 = vmax.f32 %v834, 0.0
    %v897 = vmax.f32 %v839, 0.0
    %v898 = vmax.f32 %v844, 0.0
    %v899 = vmax.f32 %v849, 0.0
    %v900 = vmax.f32 %v854, 0.0
    %v901 = vmax.f32 %v859, 0.0
    %v902 = vmax.f32 %v864, 0.0
    %v903 = vmax.f32 %v869, 0.0
    %v904 = vmax.f32 %v874, 0.0
    %v905 = vmax.f32 %v879, 0.0
    %v906 = vmax.f32 %v884, 0.0
    %v907 = vmax.f32 %v889, 0.0
    %v908 = vld [vmem:[%s9] sm:$0xff]
    %v909 = vld [vmem:[%s9 + $0x8] sm:$0xff]
    %v910 = vld [vmem:[%s10] sm:$0x1]
    %v912 = vlaneseq
    %v913 = vshrl.u32 %v912, 7
    %v914 = vsub.s32 0, %v913
    %v915 = vrot.slane %v910, %v914
    %vm917 = vcmask 130048
    %v919 = vsel %vm917, %v892, 0
    %v922 = vsel %vm917, %v893, 0
    %v925 = vsel %vm917, %v894, 0
    %v928 = vsel %vm917, %v895, 0
    %v931 = vsel %vm917, %v896, 0
    %v934 = vsel %vm917, %v897, 0
    %v937 = vsel %vm917, %v898, 0
    %v940 = vsel %vm917, %v899, 0
    %v943 = vsel %vm917, %v900, 0
    %v946 = vsel %vm917, %v901, 0
    %v949 = vsel %vm917, %v902, 0
    %v952 = vsel %vm917, %v903, 0
    %v955 = vsel %vm917, %v904, 0
    %v958 = vsel %vm917, %v905, 0
    %v961 = vsel %vm917, %v906, 0
    %v964 = vsel %vm917, %v907, 0
    %966 = vmatprep.subr.mxu0 0.0
    %967 = vmatpush1.msra.mxu0 0.0
    %968 = vmatprep.subr.mxu0 0.0
    %969 = vmatpush1.msra.mxu0 0.0
    %970 = vmatprep.subr.mxu0 0.0
    %971 = vmatpush1.msra.mxu0 0.0
    %972 = vmatprep.subr.mxu0 0.0
    %973 = vmatpush1.msra.mxu0 0.0
    %974 = vmatprep.subr.mxu0 0.0
    %975 = vmatpush1.msra.mxu0 0.0
    %976 = vmatprep.subr.mxu0 0.0
    %977 = vmatpush1.msra.mxu0 0.0
    %978 = vmatprep.subr.mxu0 0.0
    %979 = vmatpush1.msra.mxu0 0.0
    %980 = vmatprep.subr.mxu0 0.0
    %981 = vmatpush1.msra.mxu0 0.0
    %982 = vmatprep.subr.mxu0 0.0
    %983 = vmatpush1.msra.mxu0 0.0
    %984 = vmatprep.subr.mxu0 0.0
    %985 = vmatpush1.msra.mxu0 0.0
    %986 = vmatprep.subr.mxu0 0.0
    %987 = vmatpush1.msra.mxu0 0.0
    %988 = vmatprep.subr.mxu0 0.0
    %989 = vmatpush1.msra.mxu0 0.0
    %990 = vmatprep.subr.mxu0 0.0
    %991 = vmatpush1.msra.mxu0 0.0
    %992 = vmatprep.subr.mxu0 0.0
    %993 = vmatpush1.msra.mxu0 0.0
    %994 = vmatprep.subr.mxu0 0.0
    %995 = vmatpush1.msra.mxu0 %v909
    %996 = vmatprep.subr.mxu0 0.0
    %997 = vmatpush1.msra.mxu0 %v908
    %998 = vmatprep.subr.mxu0 0.0
    %999 = vmatpush2.msra.mxu0 0.0
    %1000 = vmatprep.subr.mxu0 0.0
    %1001 = vmatpush2.msra.mxu0 0.0
    %1002 = vmatprep.subr.mxu0 0.0
    %1003 = vmatpush2.msra.mxu0 0.0
    %1004 = vmatprep.subr.mxu0 0.0
    %1005 = vmatpush2.msra.mxu0 0.0
    %1006 = vmatprep.subr.mxu0 0.0
    %1007 = vmatpush2.msra.mxu0 0.0
    %1008 = vmatprep.subr.mxu0 0.0
    %1009 = vmatpush2.msra.mxu0 0.0
    %1010 = vmatprep.subr.mxu0 0.0
    %1011 = vmatpush2.msra.mxu0 0.0
    %1012 = vmatprep.subr.mxu0 0.0
    %1013 = vmatpush2.msra.mxu0 0.0
    %1014 = vmatprep.subr.mxu0 0.0
    %1015 = vmatpush2.msra.mxu0 0.0
    %1016 = vmatprep.subr.mxu0 0.0
    %1017 = vmatpush2.msra.mxu0 0.0
    %1018 = vmatprep.subr.mxu0 0.0
    %1019 = vmatpush2.msra.mxu0 0.0
    %1020 = vmatprep.subr.mxu0 0.0
    %1021 = vmatpush2.msra.mxu0 0.0
    %1022 = vmatprep.subr.mxu0 0.0
    %1023 = vmatpush2.msra.mxu0 0.0
    %1024 = vmatprep.subr.mxu0 0.0
    %1025 = vmatpush2.msra.mxu0 0.0
    %1026 = vmatprep.subr.mxu0 0.0
    %1027 = vmatpush2.msra.mxu0 0.0
    %1028 = vmatprep.subr.mxu0 0.0
    %1029 = vmatpush2.msra.mxu0 0.0
    %1030 = vmatprep.mubr.f32.mxu0 0.0
    %1031 = vmatmul.mubr.f32.gmra.mxu0 %v919
    %v1032 = vpop.f32.mrf.mxu0
    %v1033 = vadd.f32 %v915, %v1032
    %v1034 = vpop.f32.mrf.mxu0
    %1035 = vmatprep.mubr.f32.mxu0 0.0
    %1036 = vmatmul.mubr.f32.gmra.mxu0 %v922
    %v1037 = vpop.f32.mrf.mxu0
    %v1038 = vadd.f32 %v915, %v1037
    %v1039 = vpop.f32.mrf.mxu0
    %1040 = vmatprep.mubr.f32.mxu0 0.0
    %1041 = vmatmul.mubr.f32.gmra.mxu0 %v925
    %v1042 = vpop.f32.mrf.mxu0
    %v1043 = vadd.f32 %v915, %v1042
    %v1044 = vpop.f32.mrf.mxu0
    %1045 = vmatprep.mubr.f32.mxu0 0.0
    %1046 = vmatmul.mubr.f32.gmra.mxu0 %v928
    %v1047 = vpop.f32.mrf.mxu0
    %v1048 = vadd.f32 %v915, %v1047
    %v1049 = vpop.f32.mrf.mxu0
    %1050 = vmatprep.mubr.f32.mxu0 0.0
    %1051 = vmatmul.mubr.f32.gmra.mxu0 %v931
    %v1052 = vpop.f32.mrf.mxu0
    %v1053 = vadd.f32 %v915, %v1052
    %v1054 = vpop.f32.mrf.mxu0
    %1055 = vmatprep.mubr.f32.mxu0 0.0
    %1056 = vmatmul.mubr.f32.gmra.mxu0 %v934
    %v1057 = vpop.f32.mrf.mxu0
    %v1058 = vadd.f32 %v915, %v1057
    %v1059 = vpop.f32.mrf.mxu0
    %1060 = vmatprep.mubr.f32.mxu0 0.0
    %1061 = vmatmul.mubr.f32.gmra.mxu0 %v937
    %v1062 = vpop.f32.mrf.mxu0
    %v1063 = vadd.f32 %v915, %v1062
    %v1064 = vpop.f32.mrf.mxu0
    %1065 = vmatprep.mubr.f32.mxu0 0.0
    %1066 = vmatmul.mubr.f32.gmra.mxu0 %v940
    %v1067 = vpop.f32.mrf.mxu0
    %v1068 = vadd.f32 %v915, %v1067
    %v1069 = vpop.f32.mrf.mxu0
    %1070 = vmatprep.mubr.f32.mxu0 0.0
    %1071 = vmatmul.mubr.f32.gmra.mxu0 %v943
    %v1072 = vpop.f32.mrf.mxu0
    %v1073 = vadd.f32 %v915, %v1072
    %v1074 = vpop.f32.mrf.mxu0
    %1075 = vmatprep.mubr.f32.mxu0 0.0
    %1076 = vmatmul.mubr.f32.gmra.mxu0 %v946
    %v1077 = vpop.f32.mrf.mxu0
    %v1078 = vadd.f32 %v915, %v1077
    %v1079 = vpop.f32.mrf.mxu0
    %1080 = vmatprep.mubr.f32.mxu0 0.0
    %1081 = vmatmul.mubr.f32.gmra.mxu0 %v949
    %v1082 = vpop.f32.mrf.mxu0
    %v1083 = vadd.f32 %v915, %v1082
    %v1084 = vpop.f32.mrf.mxu0
    %1085 = vmatprep.mubr.f32.mxu0 0.0
    %1086 = vmatmul.mubr.f32.gmra.mxu0 %v952
    %v1087 = vpop.f32.mrf.mxu0
    %v1088 = vadd.f32 %v915, %v1087
    %v1089 = vpop.f32.mrf.mxu0
    %1090 = vmatprep.mubr.f32.mxu0 0.0
    %1091 = vmatmul.mubr.f32.gmra.mxu0 %v955
    %v1092 = vpop.f32.mrf.mxu0
    %v1093 = vadd.f32 %v915, %v1092
    %v1094 = vpop.f32.mrf.mxu0
    %1095 = vmatprep.mubr.f32.mxu0 0.0
    %1096 = vmatmul.mubr.f32.gmra.mxu0 %v958
    %v1097 = vpop.f32.mrf.mxu0
    %v1098 = vadd.f32 %v915, %v1097
    %v1099 = vpop.f32.mrf.mxu0
    %1100 = vmatprep.mubr.f32.mxu0 0.0
    %1101 = vmatmul.mubr.f32.gmra.mxu0 %v961
    %v1102 = vpop.f32.mrf.mxu0
    %v1103 = vadd.f32 %v915, %v1102
    %v1104 = vpop.f32.mrf.mxu0
    %1105 = vmatprep.mubr.f32.mxu0 0.0
    %1106 = vmatmul.mubr.f32.gmra.mxu0 %v964
    %v1107 = vpop.f32.mrf.mxu0
    %v1108 = vadd.f32 %v915, %v1107
    %v1109 = vpop.f32.mrf.mxu0
    %1110 = vdwg.mxu0
    %1111 = vst [vmem:[#allocation2] sm:$0xff] %v1033
    %1112 = vst [vmem:[#allocation2 + $0x8] sm:$0xff] %v1038
    %1113 = vst [vmem:[#allocation2 + $0x10] sm:$0xff] %v1043
    %1114 = vst [vmem:[#allocation2 + $0x18] sm:$0xff] %v1048
    %1115 = vst [vmem:[#allocation2 + $0x20] sm:$0xff] %v1053
    %1116 = vst [vmem:[#allocation2 + $0x28] sm:$0xff] %v1058
    %1117 = vst [vmem:[#allocation2 + $0x30] sm:$0xff] %v1063
    %1118 = vst [vmem:[#allocation2 + $0x38] sm:$0xff] %v1068
    %1119 = vst [vmem:[#allocation2 + $0x40] sm:$0xff] %v1073
    %1120 = vst [vmem:[#allocation2 + $0x48] sm:$0xff] %v1078
    %1121 = vst [vmem:[#allocation2 + $0x50] sm:$0xff] %v1083
    %1122 = vst [vmem:[#allocation2 + $0x58] sm:$0xff] %v1088
    %1123 = vst [vmem:[#allocation2 + $0x60] sm:$0xff] %v1093
    %1124 = vst [vmem:[#allocation2 + $0x68] sm:$0xff] %v1098
    %1125 = vst [vmem:[#allocation2 + $0x70] sm:$0xff] %v1103
    %1126 = vst [vmem:[#allocation2 + $0x78] sm:$0xff] %v1108
    // Predicated region
    $region46: #{tpu_custom_call.1} parent=1 // pred_check
      _
    $region47: #{tpu_custom_call.1} parent=1 // pred_check_branch
      %1128 = sbr.rel (0) target = $region49
    $region48: #{tpu_custom_call.1} parent=1 // pred_region
      %s1130 = ssub.s32 2048, 2048
      %1131 = vsyncadd [#allocation3], %s1130
      %s1132 = sshll.u32 [#allocation2], 4
      %s1133 = int_to_ptr.vmem [resolvable:$true] %s1132
      %1138 = dma.vmem_to_hbm [thread:$0]  %s1133, 2048, %s11, [#allocation3], 128, 128, 8
    $region49: #{tpu_custom_call.1} parent=1 // pred_fallthru
      _
    // Predicated region
    $region50: #{tpu_custom_call.1} parent=1 // pred_check
      _
    $region51: #{tpu_custom_call.1} parent=1 // pred_check_branch
      %1140 = sbr.rel (0) target = $region53
    $region52: #{tpu_custom_call.1} parent=1 // pred_region
      %1141 = dma.done [#allocation3], 2048
    $region53: #{tpu_custom_call.1} parent=1 // pred_fallthru
      _
    %1142 = vsyncpa [#allocation3], 1

</llo_original>
